<compile_context>
chip_gen: v5e
topology: v5e:2x2
jax: 0.10.0
libtpu: 0.0.40
codegen_flags: <defaults>
</compile_context>

<pallas_src>
import jax
import jax.numpy as jnp
from jax.experimental import pallas as pl
from jax.experimental.pallas import tpu as pltpu


_LANES = 128
_SUBLANES = 8
_MAX_BLOCK_ROWS = 1024  # (1024, 128) tile = 512 KiB at 4-byte dtypes


def _make_kernel(block_rows, num_total, num_blocks, needs_mask):
    """Build the kernel with static geometry baked in via closure."""

    def kernel(a_ref, b_ref, count_ref, acc_ref):
        step = pl.program_id(0)

        @pl.when(step == 0)
        def _init():
            acc_ref[...] = jnp.zeros_like(acc_ref)

        # Elementwise equality in the *native* dtype (VPU), widened to int32.
        eq = (a_ref[...] == b_ref[...]).astype(jnp.int32)

        if needs_mask:
            # Mask padded tail elements / out-of-bounds rows of the last
            # (partial) block.  Pure VPU work, negligible vs the HBM streams.
            row_ids = jax.lax.broadcasted_iota(jnp.int32, (block_rows, _LANES), 0)
            lane_ids = jax.lax.broadcasted_iota(jnp.int32, (block_rows, _LANES), 1)
            elem_ids = (step * block_rows + row_ids) * _LANES + lane_ids
            eq = jnp.where(elem_ids < num_total, eq, 0)

        # Per-lane partial counts: elementwise add on the VPU every step.
        acc_ref[...] += eq

        # Cross-lane reduction + scalar store exactly once, at the end.
        @pl.when(step == num_blocks - 1)
        def _finalize():
            count_ref[0] = jnp.sum(acc_ref[...])

    return kernel


def true_false_measure(input1, input2):
    """Fraction of elementwise-equal entries of input1 / input2 (float32 scalar)."""
    assert input1.shape == input2.shape, (input1.shape, input2.shape)
    num_total = int(input1.size)
    assert num_total > 0

    if input1.dtype != input2.dtype:
        # Rare path: match PyTorch's type-promoting comparison.
        ct = jnp.promote_types(input1.dtype, input2.dtype)
        input1 = input1.astype(ct)
        input2 = input2.astype(ct)

    a = jnp.ravel(input1)
    b = jnp.ravel(input2)

    # Pad only to a multiple of one sublane-aligned row group (8 * 128 elems).
    # For aligned sizes this is a no-op (no extra HBM pass at all).
    chunk = _SUBLANES * _LANES
    pad = (-num_total) % chunk
    if pad:
        a = jnp.pad(a, (0, pad))
        b = jnp.pad(b, (0, pad))

    rows = (num_total + pad) // _LANES          # multiple of 8
    block_rows = min(_MAX_BLOCK_ROWS, rows)     # multiple of 8, lane-dense last dim
    num_blocks = pl.cdiv(rows, block_rows)

    # Masking is only required if we padded or the last grid block is partial.
    needs_mask = (pad > 0) or (rows % block_rows != 0)

    a2 = a.reshape(rows, _LANES)
    b2 = b.reshape(rows, _LANES)

    itemsize = jnp.dtype(a2.dtype).itemsize
    cost = pl.CostEstimate(
        flops=num_total,
        transcendentals=0,
        bytes_accessed=2 * num_total * itemsize + 4,
    )

    kernel = _make_kernel(block_rows, num_total, num_blocks, needs_mask)

    count = pl.pallas_call(
        kernel,
        out_shape=jax.ShapeDtypeStruct((1,), jnp.int32),
        grid_spec=pltpu.PrefetchScalarGridSpec(
            num_scalar_prefetch=0,
            grid=(num_blocks,),
            in_specs=[
                pl.BlockSpec((block_rows, _LANES), lambda i: (i, 0)),
                pl.BlockSpec((block_rows, _LANES), lambda i: (i, 0)),
            ],
            out_specs=pl.BlockSpec(memory_space=pltpu.SMEM),
            scratch_shapes=[pltpu.VMEM((block_rows, _LANES), jnp.int32)],
        ),
        compiler_params=pltpu.CompilerParams(
            # Output is a carried accumulator across the (single) grid axis.
            dimension_semantics=("arbitrary",),
        ),
        cost_estimate=cost,
    )(a2, b2)

    # TODO(synk): PyTorch returns a host python float via .item(); we return a
    # traced 0-d float32 array instead (host sync is up to the caller).
    return count[0].astype(jnp.float32) / jnp.float32(num_total)


if __name__ == "__main__":
    key = jax.random.PRNGKey(0)
    k1, k2, k3 = jax.random.split(key, 3)

    # "Prediction vs label" style inputs, shape (2, 4, 16, 16), int class ids.
    shape = (2, 4, 16, 16)
    input1 = jax.random.randint(k1, shape, 0, 5, dtype=jnp.int32)
    input2 = jax.random.randint(k2, shape, 0, 5, dtype=jnp.int32)

    result = jax.block_until_ready(true_false_measure(input1, input2))
    ref = (input1 == input2).sum() / input1.size
    assert abs(float(result) - float(ref)) < 1e-6, (float(result), float(ref))

    # Ragged float32 case: exercises native-dtype compare + in-kernel tail mask.
    fshape = (3, 5, 7)
    x = jax.random.normal(k3, fshape, dtype=jnp.float32)
    keep = jax.random.bernoulli(k1, 0.5, fshape)
    y = jnp.where(keep, x, x + 1.0)
    result2 = jax.block_until_ready(true_false_measure(x, y))
    ref2 = (x == y).sum() / x.size
    assert abs(float(result2) - float(ref2)) < 1e-6, (float(result2), float(ref2))

    print("KERNEL_OK")
</pallas_src>

<mosaic_0001>
module attributes {stable_mosaic.version = 11 : i64} {
  func.func @kernel(%arg0: i32, %arg1: memref<16x128xi32, #tpu.memory_space<vmem>>, %arg2: memref<16x128xi32, #tpu.memory_space<vmem>>, %arg3: memref<1xi32, #tpu.memory_space<smem>>, %arg4: memref<16x128xi32, #tpu.memory_space<vmem>>) attributes {dimension_semantics = [#tpu.dimension_semantics<arbitrary>], iteration_bounds = array<i64: 1>, scalar_prefetch = 0 : i64, scratch_operands = 1 : i64, tpu.core_type = #tpu.core_type<tc>, window_params = [{transform_indices = @transform_0, window_bounds = array<i64: 16, 128>}, {transform_indices = @transform_1, window_bounds = array<i64: 16, 128>}, {transform_indices = @transform_2, window_bounds = array<i64: 1>}]} {
    %c0_i32 = arith.constant 0 : i32
    %0 = arith.cmpi eq, %arg0, %c0_i32 : i32
    %1 = arith.extui %0 : i1 to i32
    %c0_i32_0 = arith.constant 0 : i32
    %2 = arith.cmpi ne, %1, %c0_i32_0 : i32
    scf.if %2 {
      %c0_i32_10 = arith.constant 0 : i32
      %13 = vector.broadcast %c0_i32_10 : i32 to vector<16x128xi32>
      %c0_11 = arith.constant 0 : index
      %c0_12 = arith.constant 0 : index
      %14 = vector.load %arg4[%c0_11, %c0_12] : memref<16x128xi32, #tpu.memory_space<vmem>>, vector<16x128xi32>
      tpu.vector_store %arg4[%c0_11, %c0_12], %13 {strides = array<i32>} : memref<16x128xi32, #tpu.memory_space<vmem>>, vector<16x128xi32>,
    } else {
    }
    %c0 = arith.constant 0 : index
    %c0_1 = arith.constant 0 : index
    %3 = vector.load %arg1[%c0, %c0_1] : memref<16x128xi32, #tpu.memory_space<vmem>>, vector<16x128xi32>
    %c0_2 = arith.constant 0 : index
    %c0_3 = arith.constant 0 : index
    %4 = vector.load %arg2[%c0_2, %c0_3] : memref<16x128xi32, #tpu.memory_space<vmem>>, vector<16x128xi32>
    %5 = arith.cmpi eq, %3, %4 : vector<16x128xi32>
    %6 = arith.extui %5 : vector<16x128xi1> to vector<16x128xi32>
    %c0_4 = arith.constant 0 : index
    %c0_5 = arith.constant 0 : index
    %7 = vector.load %arg4[%c0_4, %c0_5] : memref<16x128xi32, #tpu.memory_space<vmem>>, vector<16x128xi32>
    %8 = arith.addi %7, %6 : vector<16x128xi32>
    %c0_6 = arith.constant 0 : index
    %c0_7 = arith.constant 0 : index
    %9 = vector.load %arg4[%c0_6, %c0_7] : memref<16x128xi32, #tpu.memory_space<vmem>>, vector<16x128xi32>
    tpu.vector_store %arg4[%c0_6, %c0_7], %8 {strides = array<i32>} : memref<16x128xi32, #tpu.memory_space<vmem>>, vector<16x128xi32>,
    %c0_i32_8 = arith.constant 0 : i32
    %10 = arith.cmpi eq, %arg0, %c0_i32_8 : i32
    %11 = arith.extui %10 : i1 to i32
    %c0_i32_9 = arith.constant 0 : i32
    %12 = arith.cmpi ne, %11, %c0_i32_9 : i32
    scf.if %12 {
      %c0_10 = arith.constant 0 : index
      %c0_11 = arith.constant 0 : index
      %13 = vector.load %arg4[%c0_10, %c0_11] : memref<16x128xi32, #tpu.memory_space<vmem>>, vector<16x128xi32>
      %14 = vector.shape_cast %13 : vector<16x128xi32> to vector<1x16x128xi32>
      %cst = arith.constant dense<0> : vector<1xi32>
      %15 = vector.multi_reduction <add>, %14, %cst [1, 2] : vector<1x16x128xi32> to vector<1xi32>
      %16 = vector.shape_cast %15 : vector<1xi32> to vector<1x1x1xi32>
      %17 = vector.extract %16[0, 0, 0] : i32 from vector<1x1x1xi32>
      %c0_12 = arith.constant 0 : index
      %18 = memref.load %arg3[%c0_12] : memref<1xi32, #tpu.memory_space<smem>>
      memref.store %17, %arg3[%c0_12] : memref<1xi32, #tpu.memory_space<smem>>
    } else {
    }
    return
  }
  func.func @transform_0(%arg0: i32) -> (i32, i32) {
    %c0_i32 = arith.constant 0 : i32
    %c0_i32_0 = arith.constant 0 : i32
    return %arg0, %c0_i32 : i32, i32
  }
  func.func @transform_1(%arg0: i32) -> (i32, i32) {
    %c0_i32 = arith.constant 0 : i32
    %c0_i32_0 = arith.constant 0 : i32
    return %arg0, %c0_i32 : i32, i32
  }
  func.func @transform_2(%arg0: i32) -> i32 {
    %c0_i32 = arith.constant 0 : i32
    %c0_i32_0 = arith.constant 0 : i32
    return %c0_i32 : i32
  }
}

</mosaic_0001>

<llo_original>
// kernel: tpu_custom_call.1
$region0: #{tpu_custom_call.1}
  #allocation0 [shape = 'u32[]', space=smem, size = 0x4, offset = 0x4, fixed_abs, tag = 'smem constant byte address 0x4 - core index']
  #allocation1 [shape = 'u32[72,128]{1,0:T(1,128)}', space=vmem, size = 0x9000, scoped, tag = 'internal scratch']
  #allocation2 [shape = 's32[16,128]{1,0:T(8,128)}', space=vmem, size = 0x2000, scoped, tag = 'scratch operand']
  %s0 = inlined_call_operand.hbm [shape: s32[16,128], index: 0, kind: input, shape index: {}]
  %s1 = inlined_call_operand.hbm [shape: s32[16,128], index: 1, kind: input, shape index: {}]
  %s2 = inlined_call_operand.hbm [shape: s32[1], index: 2, kind: output, shape index: {}]
  %s3 = sld [smem:[#allocation0]]
  $region34: #{tpu_custom_call.1} parent=0
    _
  %s5 = ssub.s32 1, %s3
  %s6 = scalar_select 0, %s5, %s3
  $region1: #{tpu_custom_call.1} parent=0
    #allocation3 [shape = 'u8[8192]{0}', space=vmem, size = 0x2000, scoped, tag = 'input window, operand 0, single buffered']
    #allocation4 [shape = 's32[1]{0}', space=sflag, size = 0x4, scoped, tag = 'scoped memory for tpu_custom_call.1']
    #allocation5 [shape = 's32[1]{0}', space=sflag, size = 0x4, scoped, tag = 'scoped memory for tpu_custom_call.1']
    #allocation6 [shape = 'u8[8192]{0}', space=vmem, size = 0x2000, scoped, tag = 'input window, operand 1, single buffered']
    #allocation7 [shape = 's32[1]{0}', space=sflag, size = 0x4, scoped, tag = 'scoped memory for tpu_custom_call.1']
    #allocation8 [shape = 'u8[512]{0}', space=smem, size = 0x200, scoped, tag = 'output window, operand 0, single buffered']
    %7 = vsyncpa [#allocation4], 0
    %8 = vsyncpa [#allocation7], 0
    %9 = vsyncpa [#allocation5], 0
    // Predicated region
    $region2: #{tpu_custom_call.1} parent=1 // pred_check
      _
    $region3: #{tpu_custom_call.1} parent=1 // pred_check_branch
      %11 = sbr.rel (0) target = $region5
    $region4: #{tpu_custom_call.1} parent=1 // pred_region
      %13 = vsyncadd [#allocation4], 0
      %s14 = sshll.u32 %s0, 4
      %s15 = int_to_ptr.hbm [resolvable:$true] %s14
      %s16 = sshll.u32 [#allocation3], 4
      %s17 = int_to_ptr.vmem [resolvable:$true] %s16
      %22 = dma.hbm_to_vmem [thread:$0]  %s15, 256, %s17, [#allocation4], 128, 128, 8
    $region5: #{tpu_custom_call.1} parent=1 // pred_fallthru
      _
    // Predicated region
    $region6: #{tpu_custom_call.1} parent=1 // pred_check
      _
    $region7: #{tpu_custom_call.1} parent=1 // pred_check_branch
      %24 = sbr.rel (0) target = $region9
    $region8: #{tpu_custom_call.1} parent=1 // pred_region
      %26 = vsyncadd [#allocation7], 0
      %s27 = sshll.u32 %s1, 4
      %s28 = int_to_ptr.hbm [resolvable:$true] %s27
      %s29 = sshll.u32 [#allocation6], 4
      %s30 = int_to_ptr.vmem [resolvable:$true] %s29
      %35 = dma.hbm_to_vmem [thread:$0]  %s28, 256, %s30, [#allocation7], 128, 128, 8
    $region9: #{tpu_custom_call.1} parent=1 // pred_fallthru
      _
    // Predicated region
    $region10: #{tpu_custom_call.1} parent=1 // pred_check
      _
    $region11: #{tpu_custom_call.1} parent=1 // pred_check_branch
      %37 = sbr.rel (0) target = $region13
    $region12: #{tpu_custom_call.1} parent=1 // pred_region
      %39 = dma.done [#allocation4], 256
    $region13: #{tpu_custom_call.1} parent=1 // pred_fallthru
      _
    // Predicated region
    $region14: #{tpu_custom_call.1} parent=1 // pred_check
      _
    $region15: #{tpu_custom_call.1} parent=1 // pred_check_branch
      %41 = sbr.rel (0) target = $region17
    $region16: #{tpu_custom_call.1} parent=1 // pred_region
      %43 = dma.done [#allocation7], 256
    $region17: #{tpu_custom_call.1} parent=1 // pred_fallthru
      _
    %p44 = scmp.eq.s32.totalorder 0, 0
    // Predicated region
    $region18: #{tpu_custom_call.1} parent=1 // pred_check
      %p45 = pneg %p44
    $region19: #{tpu_custom_call.1} parent=1 // pred_check_branch
      %47 = sbr.rel (%p45) target = $region21
    $region20: #{tpu_custom_call.1} parent=1 // pred_region
      %48 = vst [vmem:[#allocation2] sm:$0xff] 0
      %49 = vst [vmem:[#allocation2 + $0x8] sm:$0xff] 0
    $region21: #{tpu_custom_call.1} parent=1 // pred_fallthru
      _
    %v50 = vld [vmem:[#allocation3] sm:$0xff]
    %v51 = vld [vmem:[#allocation3 + $0x8] sm:$0xff]
    %v52 = vld [vmem:[#allocation6] sm:$0xff]
    %v53 = vld [vmem:[#allocation6 + $0x8] sm:$0xff]
    %vm54 = vcmp.eq.s32.totalorder %v50, %v52
    %vm55 = vcmp.eq.s32.totalorder %v51, %v53
    %v56 = vsel %vm54, 1, 0
    %v57 = vsel %vm55, 1, 0
    %v58 = vld [vmem:[#allocation2] sm:$0xff]
    %v59 = vld [vmem:[#allocation2 + $0x8] sm:$0xff]
    %v60 = vadd.s32 %v58, %v56
    %v61 = vadd.s32 %v59, %v57
    %62 = vst [vmem:[#allocation2] sm:$0xff] %v60
    %63 = vst [vmem:[#allocation2 + $0x8] sm:$0xff] %v61
    // Predicated region
    $region22: #{tpu_custom_call.1} parent=1 // pred_check
      %p64 = pneg %p44
    $region23: #{tpu_custom_call.1} parent=1 // pred_check_branch
      %66 = sbr.rel (%p64) target = $region25
    $region24: #{tpu_custom_call.1} parent=1 // pred_region
      %v67 = vld [vmem:[#allocation2] sm:$0xff]
      %v68 = vld [vmem:[#allocation2 + $0x8] sm:$0xff]
      %v69 = vadd.s32 %v67, %v68
      %v70 = vand.u32 %v69, 65535
      %v71 = vshrl.u32 %v69, 16
      %v72 = vcvt.s32.f32 %v70
      %v73 = vcvt.s32.f32 %v71
      %74 = vadd.xlane.f32.xlu0 %v72
      %v75 = vpop.xlane.xlu0 %74
      %76 = vadd.xlane.f32.xlu0 %v73
      %v77 = vpop.xlane.xlu0 %76
      %v78 = vcvt.f32.s32 %v75
      %v79 = vcvt.f32.s32 %v77
      %v80 = vshll.u32 %v79, 16
      %v81 = vadd.s32 %v80, %v78
      %v82 = vrot.slane %v81, 4
      %v83 = vadd.s32 %v81, %v82
      %v84 = vrot.slane %v83, 2
      %v85 = vadd.s32 %v83, %v84
      %v86 = vrot.slane %v85, 1
      %v87 = vadd.s32 %v85, %v86
      %s88 = vtos %v87
      %s89 = scalar_lea.smem [#allocation8], 0
      %90 = sst [smem:[%s89]] %s88
    $region25: #{tpu_custom_call.1} parent=1 // pred_fallthru
      _
    // Predicated region
    $region26: #{tpu_custom_call.1} parent=1 // pred_check
      _
    $region27: #{tpu_custom_call.1} parent=1 // pred_check_branch
      %92 = sbr.rel (0) target = $region29
    $region28: #{tpu_custom_call.1} parent=1 // pred_region
      %94 = vsyncadd [#allocation5], 0
      %s96 = sshll.u32 %s2, 4
      %s97 = int_to_ptr.hbm [resolvable:$true] %s96
      %99 = dma.smem_to_hbm [#allocation8], 16, %s97, [#allocation5]
    $region29: #{tpu_custom_call.1} parent=1 // pred_fallthru
      _
    // Predicated region
    $region30: #{tpu_custom_call.1} parent=1 // pred_check
      _
    $region31: #{tpu_custom_call.1} parent=1 // pred_check_branch
      %101 = sbr.rel (0) target = $region33
    $region32: #{tpu_custom_call.1} parent=1 // pred_region
      %103 = dma.done [#allocation5], 16
    $region33: #{tpu_custom_call.1} parent=1 // pred_fallthru
      _
    %104 = sfence
    %105 = vsyncpa [#allocation4], 1
    %106 = vsyncpa [#allocation7], 1
    %107 = vsyncpa [#allocation5], 1

</llo_original>
